<compile_context>
chip_gen: v5e
topology: v5e:2x2
jax: 0.10.0
libtpu: 0.0.40
codegen_flags: <defaults>
</compile_context>

<pallas_src>
import jax
import jax.numpy as jnp
from jax.experimental import pallas as pl
from jax.experimental.pallas import tpu as pltpu

# Layer sizes exactly as in the PyTorch module.
LAYER_SIZES = [3, 20, 40, 50, 60, 70, 1]
_F = LAYER_SIZES[0]

# Rows of 128 lanes per grid block (multiple of 8).
#   _MAX_TR = 1024  → 131072 batch elements per block.
#   Per-block VMEM (double-buffered input + output) ≈ 2*(3+1)*1024*128*4 B ≈ 4.2 MiB,
#   comfortably under the 32 MiB scoped default on every generation (incl. v7x).
_MAX_TR = 1024


def _folded_affine_kernel(wb_ref, x_ref, o_ref):
    """o = w0*x0 + w1*x1 + w2*x2 + b, on dense (TR, 128) planes.

    wb_ref : SMEM f32[4]          folded affine map [w0, w1, w2, b]
    x_ref  : VMEM f32[3, TR, 128] feature planes; batch tiled (sublane, lane)-dense
    o_ref  : VMEM f32[TR, 128]    dense output plane → unmasked vector stores
    """
    acc = wb_ref[0] * x_ref[0]
    acc = acc + wb_ref[1] * x_ref[1]
    acc = acc + wb_ref[2] * x_ref[2]
    o_ref[...] = acc + wb_ref[3]


def init_params(key):
    """Deterministic init mimicking nn.Linear's U(-1/sqrt(fan_in), +1/sqrt(fan_in)).

    Weights stored as [in, out] so a plain-JAX forward is x @ W + b.
    """
    params = []
    for i in range(len(LAYER_SIZES) - 1):
        fan_in, fan_out = LAYER_SIZES[i], LAYER_SIZES[i + 1]
        key, kw, kb = jax.random.split(key, 3)
        bound = 1.0 / jnp.sqrt(jnp.float32(fan_in))
        w = jax.random.uniform(kw, (fan_in, fan_out), jnp.float32, -bound, bound)
        b = jax.random.uniform(kb, (1, fan_out), jnp.float32, -bound, bound)
        params.append((w, b))
    return params


def fold_params(params):
    """Fold the activation-free chain into a single affine map.

    ((x@W1+b1)@W2+b2)...  ==  x @ (W1@W2@...@W6) + fold(b)
    Returns (w_eff [3,1], b_eff [1,1]).  Tiny matmuls, done in plain JAX.
    """
    w_eff, b_eff = params[0]
    for w, b in params[1:]:
        b_eff = b_eff @ w + b
        w_eff = w_eff @ w
    return w_eff, b_eff


def net_forward(x, params, *, feature_major=False, small_batch_threshold=4096):
    """Forward pass of Net.

    x : [B, 3] f32 (default) or [3, B] f32 if feature_major=True
        (feature-major producers skip the wrapper transpose entirely).
    Returns [B, 1] f32, identical semantics to Net.forward.
    """
    w_eff, b_eff = fold_params(params)          # (3,1), (1,1)
    B = x.shape[1] if feature_major else x.shape[0]

    # Small-batch fast path: the folded net is 4 scalars; a fused XLA affine
    # beats pallas_call launch + layout plumbing at this size.
    if B <= small_batch_threshold:
        x_bm = (x.T if feature_major else x).astype(jnp.float32)
        return (x_bm @ w_eff + b_eff).astype(jnp.float32)

    wb = jnp.concatenate(
        [w_eff.reshape(-1), b_eff.reshape(-1)]).astype(jnp.float32)     # (4,)

    # ---- tile sizing: dense (TR,128) planes, TR multiple of 8, ≥2 blocks ----
    R_need = pl.cdiv(B, 128)                              # 128-lane rows of batch
    TR = min(_MAX_TR, max(8, pl.cdiv(R_need, 8) * 8))
    if R_need > 8 and pl.cdiv(R_need, TR) < 2:
        # Split into ≥2 blocks so the "parallel" axis shards across v7x's 2 TCs.
        TR = max(8, pl.cdiv(pl.cdiv(R_need, 2), 8) * 8)
    n_blocks = pl.cdiv(R_need, TR)
    R = n_blocks * TR
    Bp = R * 128

    # Feature-major (3, Bp) view; pad only the ragged tail (no zeros+scatter).
    x_fm = (x if feature_major else x.T).astype(jnp.float32)
    if Bp != B:
        x_fm = jnp.pad(x_fm, ((0, 0), (0, Bp - B)))       # pad lanes compute b_eff
    x_t = x_fm.reshape(_F, R, 128)

    cost = pl.CostEstimate(
        flops=7 * Bp,                                     # 3 mul + 3 add + bias / elem
        transcendentals=0,
        bytes_accessed=(_F * Bp + Bp) * 4 + wb.size * 4,
    )

    out_t = pl.pallas_call(
        _folded_affine_kernel,
        out_shape=jax.ShapeDtypeStruct((R, 128), jnp.float32),
        grid=(n_blocks,),
        in_specs=[
            # 4 folded scalars live in SMEM, passed whole (no per-step DMA).
            pl.BlockSpec(memory_space=pltpu.MemorySpace.SMEM),
            # Dense feature planes: (3, TR, 128) per grid step.
            pl.BlockSpec((_F, TR, 128), lambda i: (0, i, 0)),
        ],
        out_specs=pl.BlockSpec((TR, 128), lambda i: (i, 0)),
        compiler_params=pltpu.CompilerParams(dimension_semantics=("parallel",)),
        cost_estimate=cost,
    )(wb, x_t)

    return out_t.reshape(Bp)[:B].reshape(B, 1)


def net_forward_ref(x, params):
    """Unfolded pure-JAX reference (matches the PyTorch forward op-for-op)."""
    h = x
    for w, b in params:
        h = h @ w + b
    return h


if __name__ == "__main__":
    key = jax.random.PRNGKey(0)
    key, kx = jax.random.split(key)
    params = init_params(key)

    # 1) Small demo batch ([B, 3] -> [B, 1]) — exercises the fused-XLA fast path.
    B = 8
    x = jax.random.normal(kx, (B, _F), jnp.float32)
    out = jax.block_until_ready(net_forward(x, params))
    ref = net_forward_ref(x, params)
    assert out.shape == (B, 1), out.shape
    assert jnp.allclose(out, ref, atol=1e-4, rtol=1e-4), (out, ref)

    # 2) Pallas kernel on a modest ragged batch (forces the kernel path):
    #    multi-block "parallel" grid, tail padding, dense (TR,128) layout.
    key, kx2 = jax.random.split(key)
    B2 = 5000
    x2 = jax.random.normal(kx2, (B2, _F), jnp.float32)
    out2 = jax.block_until_ready(
        net_forward(x2, params, small_batch_threshold=0))
    ref2 = net_forward_ref(x2, params)
    assert out2.shape == (B2, 1), out2.shape
    assert jnp.allclose(out2, ref2, atol=1e-4, rtol=1e-4)

    # 3) Feature-major producer path (skips the wrapper transpose entirely).
    key, kx3 = jax.random.split(key)
    B3 = 8192
    x3 = jax.random.normal(kx3, (_F, B3), jnp.float32)
    out3 = jax.block_until_ready(
        net_forward(x3, params, feature_major=True, small_batch_threshold=0))
    ref3 = net_forward_ref(x3.T, params)
    assert out3.shape == (B3, 1), out3.shape
    assert jnp.allclose(out3, ref3, atol=1e-4, rtol=1e-4)

    print("KERNEL_OK")
</pallas_src>

<mosaic_0001>
module attributes {stable_mosaic.version = 11 : i64} {
  func.func @_folded_affine_kernel(%arg0: i32, %arg1: memref<4xf32, #tpu.memory_space<smem>>, %arg2: memref<3x24x128xf32, #tpu.memory_space<vmem>>, %arg3: memref<24x128xf32, #tpu.memory_space<vmem>>) attributes {dimension_semantics = [#tpu.dimension_semantics<parallel>], iteration_bounds = array<i64: 2>, scalar_prefetch = 0 : i64, scratch_operands = 0 : i64, tpu.core_type = #tpu.core_type<tc>, window_params = [{transform_indices = @transform_0, window_bounds = array<i64: 4>}, {transform_indices = @transform_1, window_bounds = array<i64: 3, 24, 128>}, {transform_indices = @transform_2, window_bounds = array<i64: 24, 128>}]} {
    %c0 = arith.constant 0 : index
    %0 = memref.load %arg1[%c0] : memref<4xf32, #tpu.memory_space<smem>>
    %c0_0 = arith.constant 0 : index
    %c0_1 = arith.constant 0 : index
    %c0_2 = arith.constant 0 : index
    %1 = vector.load %arg2[%c0_0, %c0_1, %c0_2] : memref<3x24x128xf32, #tpu.memory_space<vmem>>, vector<1x24x128xf32>
    %2 = vector.shape_cast %1 : vector<1x24x128xf32> to vector<24x128xf32>
    %3 = vector.broadcast %0 : f32 to vector<24x128xf32>
    %4 = arith.mulf %3, %2 : vector<24x128xf32>
    %c1 = arith.constant 1 : index
    %5 = memref.load %arg1[%c1] : memref<4xf32, #tpu.memory_space<smem>>
    %c1_3 = arith.constant 1 : index
    %c0_4 = arith.constant 0 : index
    %c0_5 = arith.constant 0 : index
    %6 = vector.load %arg2[%c1_3, %c0_4, %c0_5] : memref<3x24x128xf32, #tpu.memory_space<vmem>>, vector<1x24x128xf32>
    %7 = vector.shape_cast %6 : vector<1x24x128xf32> to vector<24x128xf32>
    %8 = vector.broadcast %5 : f32 to vector<24x128xf32>
    %9 = arith.mulf %8, %7 : vector<24x128xf32>
    %10 = arith.addf %4, %9 : vector<24x128xf32>
    %c2 = arith.constant 2 : index
    %11 = memref.load %arg1[%c2] : memref<4xf32, #tpu.memory_space<smem>>
    %c2_6 = arith.constant 2 : index
    %c0_7 = arith.constant 0 : index
    %c0_8 = arith.constant 0 : index
    %12 = vector.load %arg2[%c2_6, %c0_7, %c0_8] : memref<3x24x128xf32, #tpu.memory_space<vmem>>, vector<1x24x128xf32>
    %13 = vector.shape_cast %12 : vector<1x24x128xf32> to vector<24x128xf32>
    %14 = vector.broadcast %11 : f32 to vector<24x128xf32>
    %15 = arith.mulf %14, %13 : vector<24x128xf32>
    %16 = arith.addf %10, %15 : vector<24x128xf32>
    %c3 = arith.constant 3 : index
    %17 = memref.load %arg1[%c3] : memref<4xf32, #tpu.memory_space<smem>>
    %18 = vector.broadcast %17 : f32 to vector<24x128xf32>
    %19 = arith.addf %16, %18 : vector<24x128xf32>
    %c0_9 = arith.constant 0 : index
    %c0_10 = arith.constant 0 : index
    %20 = vector.load %arg3[%c0_9, %c0_10] : memref<24x128xf32, #tpu.memory_space<vmem>>, vector<24x128xf32>
    tpu.vector_store %arg3[%c0_9, %c0_10], %19 {strides = array<i32>} : memref<24x128xf32, #tpu.memory_space<vmem>>, vector<24x128xf32>,
    return
  }
  func.func @transform_0(%arg0: i32) -> i32 {
    %c0_i32 = arith.constant 0 : i32
    %c0_i32_0 = arith.constant 0 : i32
    return %c0_i32 : i32
  }
  func.func @transform_1(%arg0: i32) -> (i32, i32, i32) {
    %c0_i32 = arith.constant 0 : i32
    %c0_i32_0 = arith.constant 0 : i32
    %c0_i32_1 = arith.constant 0 : i32
    return %c0_i32, %arg0, %c0_i32_0 : i32, i32, i32
  }
  func.func @transform_2(%arg0: i32) -> (i32, i32) {
    %c0_i32 = arith.constant 0 : i32
    %c0_i32_0 = arith.constant 0 : i32
    return %arg0, %c0_i32 : i32, i32
  }
}

</mosaic_0001>

<llo_original>
// kernel: tpu_custom_call.1
$region0: #{tpu_custom_call.1}
  #allocation0 [shape = 'u32[]', space=smem, size = 0x4, offset = 0x4, fixed_abs, tag = 'smem constant byte address 0x4 - core index']
  #allocation1 [shape = 'u32[72,128]{1,0:T(1,128)}', space=vmem, size = 0x9000, scoped, tag = 'internal scratch']
  #allocation8 [shape = 's32[]', space=sflag, size = 0x4, offset = 0, fixed_abs, tag = 'sflag constant byte address 0x0 - dummy sync flag']
  %s0 = inlined_call_operand.hbm [shape: f32[4], index: 0, kind: input, shape index: {}]
  %s1 = inlined_call_operand.hbm [shape: f32[3,48,128], index: 1, kind: input, shape index: {}]
  %s2 = inlined_call_operand.hbm [shape: f32[48,128], index: 2, kind: output, shape index: {}]
  %s3 = sld [smem:[#allocation0]]
  $region49: #{tpu_custom_call.1} parent=0
    _
  %s5 = ssub.s32 1, %s3
  %s6 = scalar_select 0, %s5, %s3
  $region1: #{tpu_custom_call.1} parent=0
    #allocation2 [shape = 'u8[512]{0}', space=smem, size = 0x200, scoped, tag = 'input window, operand 0, single buffered']
    #allocation3 [shape = 's32[2]{0}', space=sflag, size = 0x8, scoped, tag = 'scoped memory for tpu_custom_call.1']
    #allocation4 [shape = 's32[2]{0}', space=sflag, size = 0x8, scoped, tag = 'scoped memory for tpu_custom_call.1']
    #allocation5 [shape = 's32[2]{0}', space=sflag, size = 0x8, scoped, tag = 'scoped memory for tpu_custom_call.1']
    #allocation6 [shape = 'u8[73728]{0}', space=vmem, size = 0x12000, scoped, tag = 'input window, operand 1']
    #allocation7 [shape = 'u8[24576]{0}', space=vmem, size = 0x6000, scoped, tag = 'output window, operand 0']
    %7 = vsyncpa [#allocation5], 0
    %8 = vsyncpa [#allocation3], 0
    %s9 = scalar_lea.sflag [#allocation3], 1
    %10 = vsyncpa %s9, 0
    %11 = vsyncpa [#allocation4], 0
    %s12 = scalar_lea.sflag [#allocation4], 1
    %13 = vsyncpa %s12, 0
    loop: start=0, step=1, limit=4
    $region2: #{tpu_custom_call.1} parent=1 // loop_pre_header
      _
    $region3: #{tpu_custom_call.1} parent=1 // loop_header
      %s15 = sphi 0, %s19
      %p16 = scmp.ge.s32.totalorder %s15, 4
      %s23 = sphi 0, %s23
      %s25 = sphi 0, %s23
      %s26 = sphi 0, %s25
      %s40 = sphi 0, %s26
      %s46 = sphi 0, %s48
      %s49 = sphi 0, %s46
      %s50 = sphi 0, %s49
      %s66 = sphi 0, %s50
      %s72 = sphi 0, %s74
      %s75 = sphi 0, %s72
      %s76 = sphi 0, %s75
      %s92 = sphi 0, %s76
    $region4: #{tpu_custom_call.1} parent=1 // loop_header_branch
      %18 = sbr.rel (%p16) target = $region8
    $region5: #{tpu_custom_call.1} parent=1 // loop_body
      %s20 = ssub.s32 %s15, 1
      %s21 = ssub.s32 %s15, 2
      %s22 = sadd.s32 %s15, 1
      %s24 = sadd.s32 %s23, 1
      %p27 = scmp.eq.s32.totalorder %s15, 1
      %p28 = scmp.ne.s32.totalorder %s23, %s25
      %p29 = scmp.eq.s32.totalorder %s15, 0
      %p30 = por %p28, %p29
      %p31 = scmp.ne.s32.totalorder %s23, %s25
      %p32 = scmp.eq.s32.totalorder %s20, 1
      %p33 = por %p31, %p32
      %p34 = scmp.ne.s32.totalorder %s25, %s26
      %p35 = scmp.eq.s32.totalorder %s20, 0
      %p36 = por %p34, %p35
      %p37 = scmp.ne.s32.totalorder %s25, %s26
      %p38 = scmp.eq.s32.totalorder %s21, 1
      %p39 = por %p37, %p38
      %p41 = scmp.ne.s32.totalorder %s26, %s40
      %p42 = scmp.eq.s32.totalorder %s21, 0
      %p43 = por %p41, %p42
      %s44 = ssub.s32 %s15, %s22
      %p45 = scmp.eq.s32.totalorder %s44, 0
      %s47 = sadd.s32 %s46, 1
      %s48 = scalar_select %p45, %s46, %s47
      %p51 = pneg %p45
      %p52 = scmp.eq.s32.totalorder %s15, 1
      %p53 = por %p51, %p52
      %p54 = scmp.ne.s32.totalorder %s46, %s49
      %p55 = scmp.eq.s32.totalorder %s15, 0
      %p56 = por %p54, %p55
      %p57 = scmp.ne.s32.totalorder %s46, %s49
      %p58 = scmp.eq.s32.totalorder %s20, 1
      %p59 = por %p57, %p58
      %p60 = scmp.ne.s32.totalorder %s49, %s50
      %p61 = scmp.eq.s32.totalorder %s20, 0
      %p62 = por %p60, %p61
      %p63 = scmp.ne.s32.totalorder %s49, %s50
      %p64 = scmp.eq.s32.totalorder %s21, 1
      %p65 = por %p63, %p64
      %p67 = scmp.ne.s32.totalorder %s50, %s66
      %p68 = scmp.eq.s32.totalorder %s21, 0
      %p69 = por %p67, %p68
      %s70 = ssub.s32 %s15, %s22
      %p71 = scmp.eq.s32.totalorder %s70, 0
      %s73 = sadd.s32 %s72, 1
      %s74 = scalar_select %p71, %s72, %s73
      %p77 = pneg %p71
      %p78 = scmp.eq.s32.totalorder %s15, 1
      %p79 = por %p77, %p78
      %p80 = scmp.ne.s32.totalorder %s72, %s75
      %p81 = scmp.eq.s32.totalorder %s15, 0
      %p82 = por %p80, %p81
      %p83 = scmp.ne.s32.totalorder %s72, %s75
      %p84 = scmp.eq.s32.totalorder %s20, 1
      %p85 = por %p83, %p84
      %p86 = scmp.ne.s32.totalorder %s75, %s76
      %p87 = scmp.eq.s32.totalorder %s20, 0
      %p88 = por %p86, %p87
      %p89 = scmp.ne.s32.totalorder %s75, %s76
      %p90 = scmp.eq.s32.totalorder %s21, 1
      %p91 = por %p89, %p90
      %p93 = scmp.ne.s32.totalorder %s76, %s92
      %p94 = scmp.eq.s32.totalorder %s21, 0
      %p95 = por %p93, %p94
      %p96 = scmp.le.s32.totalorder 1, %s15
      %p97 = scmp.lt.s32.totalorder %s15, 3
      %p98 = pnand %p96, %p97
      %p99 = pneg %p98
      // Predicated region
      $region9: #{tpu_custom_call.1} parent=5 // pred_check
        _
      $region10: #{tpu_custom_call.1} parent=5 // pred_check_branch
        %101 = sbr.rel (%p98) target = $region12
      $region11: #{tpu_custom_call.1} parent=5 // pred_region
        %s102 = ssub.s32 %s15, 1
        // Predicated region
        $region13: #{tpu_custom_call.1} parent=11 // pred_check
          %p103 = pneg %p36
        $region14: #{tpu_custom_call.1} parent=11 // pred_check_branch
          %105 = sbr.rel (%p103) target = $region16
        $region15: #{tpu_custom_call.1} parent=11 // pred_region
          %107 = vsyncadd [#allocation5], 0
          %s109 = sshll.u32 %s0, 4
          %s110 = int_to_ptr.hbm [resolvable:$true] %s109
          %112 = dma.hbm_to_smem %s110, 16, [#allocation2], [#allocation5]
        $region16: #{tpu_custom_call.1} parent=11 // pred_fallthru
          _
      $region12: #{tpu_custom_call.1} parent=5 // pred_fallthru
        _
      %p113 = scmp.lt.s32.totalorder %s15, 2
      // Predicated region
      $region17: #{tpu_custom_call.1} parent=5 // pred_check
        %p114 = pneg %p113
      $region18: #{tpu_custom_call.1} parent=5 // pred_check_branch
        %116 = sbr.rel (%p114) target = $region20
      $region19: #{tpu_custom_call.1} parent=5 // pred_region
        // Predicated region
        $region21: #{tpu_custom_call.1} parent=19 // pred_check
          %p117 = pneg %p56
        $region22: #{tpu_custom_call.1} parent=19 // pred_check_branch
          %119 = sbr.rel (%p117) target = $region24
        $region23: #{tpu_custom_call.1} parent=19 // pred_region
          #allocation9 [shape = 'u32[6]{0}', space=smem, size = 0x18, scoped, tag = 'DMA stride descriptor']
          %s120 = sand.u32 %s46, 1
          %s121 = scalar_lea.sflag [#allocation3], %s120
          %s122 = sand.u32 %s46, 1
          %s123 = smul.addr %s122, 72
          %s124 = scalar_lea.vmem [#allocation6], %s123
          %s125 = smul.u32 3, %s15
          %127 = vsyncadd %s121, 0
          %s128 = smul.addr %s125, 8
          %s129 = scalar_lea.hbm %s1, %s128
          %s131 = sshll.u32 1, 14
          %s132 = sxor.u32 4294967295, %s131
          %s134 = sld [smem:[#allocation0]]
          %s135 = sadd.s32 2, %s134
          %s137 = sshll.u32 7, 26
          %s138 = sxor.u32 4294967295, %s137
          %s139 = sand.u32 0, %s138
          %s140 = sshll.u32 %s135, 26
          %s141 = sor.u32 %s139, %s140
          %s142 = sshll.u32 %s129, 4
          %s143 = int_to_ptr.hbm [resolvable:$true] %s142
          %s144 = sshll.u32 %s124, 4
          %s145 = int_to_ptr.vmem [resolvable:$true] %s144
          %151 = sst [smem:[#allocation9]] 768
          %s152 = scalar_lea.smem [#allocation9], 1
          %153 = sst [smem:[%s152]] 384
          %s154 = scalar_lea.smem [#allocation9], 2
          %155 = sst [smem:[%s154]] 3
          %s156 = scalar_lea.smem [#allocation9], 3
          %157 = sst [smem:[%s156]] 128
          %s158 = scalar_lea.smem [#allocation9], 4
          %159 = sst [smem:[%s158]] 128
          %s160 = scalar_lea.smem [#allocation9], 5
          %161 = sst [smem:[%s160]] 8
          %163 = dma.general %s143, 1152, %s145, %s121, [#allocation8], [#allocation9], %s141, 0
        $region24: #{tpu_custom_call.1} parent=19 // pred_fallthru
          _
      $region20: #{tpu_custom_call.1} parent=5 // pred_fallthru
        _
      %p164 = scmp.le.s32.totalorder 1, %s15
      %p165 = scmp.lt.s32.totalorder %s15, 3
      %p166 = pnand %p164, %p165
      %p167 = pneg %p166
      // Predicated region
      $region25: #{tpu_custom_call.1} parent=5 // pred_check
        _
      $region26: #{tpu_custom_call.1} parent=5 // pred_check_branch
        %169 = sbr.rel (%p166) target = $region28
      $region27: #{tpu_custom_call.1} parent=5 // pred_region
        %s170 = ssub.s32 %s15, 1
        // Predicated region
        $region29: #{tpu_custom_call.1} parent=27 // pred_check
          %p171 = pneg %p36
        $region30: #{tpu_custom_call.1} parent=27 // pred_check_branch
          %173 = sbr.rel (%p171) target = $region32
        $region31: #{tpu_custom_call.1} parent=27 // pred_region
          %175 = dma.done [#allocation5], 16
        $region32: #{tpu_custom_call.1} parent=27 // pred_fallthru
          _
        %s176 = sand.u32 %s49, 1
        %s177 = scalar_lea.sflag [#allocation3], %s176
        %s178 = sand.u32 %s49, 1
        %s179 = smul.addr %s178, 72
        %s180 = scalar_lea.vmem [#allocation6], %s179
        // Predicated region
        $region33: #{tpu_custom_call.1} parent=27 // pred_check
          %p181 = pneg %p62
        $region34: #{tpu_custom_call.1} parent=27 // pred_check_branch
          %183 = sbr.rel (%p181) target = $region36
        $region35: #{tpu_custom_call.1} parent=27 // pred_region
          %185 = dma.done %s177, 1152
        $region36: #{tpu_custom_call.1} parent=27 // pred_fallthru
          _
        %186 = sfence
        %p187 = pneg %p36
        %p188 = pneg %p33
        %s189 = sand.u32 %s49, 1
        %s190 = scalar_lea.sflag [#allocation3], %s189
        %s191 = sand.u32 %s49, 1
        %s192 = smul.addr %s191, 72
        %s193 = scalar_lea.vmem [#allocation6], %s192
        %p194 = pneg %p62
        %p195 = pneg %p59
        %p196 = pneg %p88
        %p197 = pneg %p85
        %s198 = sand.u32 %s75, 1
        %s199 = scalar_lea.sflag [#allocation4], %s198
        %s200 = sand.u32 %s75, 1
        %s201 = smul.addr %s200, 24
        %s202 = scalar_lea.vmem [#allocation7], %s201
        %s203 = smul.u32 3, %s20
        %s204 = smul.u32 3, %s20
        %s205 = sld [smem:[#allocation2]]
        %v206 = vld [vmem:[%s180] sm:$0xff]
        %v207 = vld [vmem:[%s180 + $0x8] sm:$0xff]
        %v208 = vld [vmem:[%s180 + $0x10] sm:$0xff]
        %v209 = vstv %s205
        %v210 = vmul.f32 %v209, %v206
        %v211 = vmul.f32 %v209, %v207
        %v212 = vmul.f32 %v209, %v208
        %s213 = sld [smem:[#allocation2 + $0x1]]
        %s214 = scalar_lea.vmem %s180, 24 [#allocation6]
        %v215 = vld [vmem:[%s214] sm:$0xff]
        %v216 = vld [vmem:[%s214 + $0x8] sm:$0xff]
        %v217 = vld [vmem:[%s214 + $0x10] sm:$0xff]
        %v218 = vstv %s213
        %v219 = vmul.f32 %v218, %v215
        %v220 = vmul.f32 %v218, %v216
        %v221 = vmul.f32 %v218, %v217
        %v222 = vadd.f32 %v210, %v219
        %v223 = vadd.f32 %v211, %v220
        %v224 = vadd.f32 %v212, %v221
        %s225 = sld [smem:[#allocation2 + $0x2]]
        %s226 = scalar_lea.vmem %s180, 48 [#allocation6]
        %v227 = vld [vmem:[%s226] sm:$0xff]
        %v228 = vld [vmem:[%s226 + $0x8] sm:$0xff]
        %v229 = vld [vmem:[%s226 + $0x10] sm:$0xff]
        %v230 = vstv %s225
        %v231 = vmul.f32 %v230, %v227
        %v232 = vmul.f32 %v230, %v228
        %v233 = vmul.f32 %v230, %v229
        %v234 = vadd.f32 %v222, %v231
        %v235 = vadd.f32 %v223, %v232
        %v236 = vadd.f32 %v224, %v233
        %s237 = sld [smem:[#allocation2 + $0x3]]
        %v238 = vstv %s237
        %v239 = vadd.f32 %v234, %v238
        %v240 = vadd.f32 %v235, %v238
        %v241 = vadd.f32 %v236, %v238
        %242 = vst [vmem:[%s202] sm:$0xff] %v239
        %243 = vst [vmem:[%s202 + $0x8] sm:$0xff] %v240
        %244 = vst [vmem:[%s202 + $0x10] sm:$0xff] %v241
        %s245 = sand.u32 %s75, 1
        %s246 = scalar_lea.sflag [#allocation4], %s245
        %s247 = sand.u32 %s75, 1
        %s248 = smul.addr %s247, 24
        %s249 = scalar_lea.vmem [#allocation7], %s248
        // Predicated region
        $region37: #{tpu_custom_call.1} parent=27 // pred_check
          %p250 = pneg %p85
        $region38: #{tpu_custom_call.1} parent=27 // pred_check_branch
          %252 = sbr.rel (%p250) target = $region40
        $region39: #{tpu_custom_call.1} parent=27 // pred_region
          %s253 = smul.u32 3, %s20
          %255 = vsyncadd %s246, 0
          %s256 = smul.addr %s253, 8
          %s257 = scalar_lea.hbm %s2, %s256
          %s258 = sshll.u32 %s249, 4
          %s259 = int_to_ptr.vmem [resolvable:$true] %s258
          %s260 = sshll.u32 %s257, 4
          %s261 = int_to_ptr.hbm [resolvable:$true] %s260
          %266 = dma.vmem_to_hbm [thread:$0]  %s259, 384, %s261, %s246, 128, 128, 8
        $region40: #{tpu_custom_call.1} parent=27 // pred_fallthru
          _
      $region28: #{tpu_custom_call.1} parent=5 // pred_fallthru
        _
      %p267 = scmp.le.s32.totalorder 2, %s15
      // Predicated region
      $region41: #{tpu_custom_call.1} parent=5 // pred_check
        %p268 = pneg %p267
      $region42: #{tpu_custom_call.1} parent=5 // pred_check_branch
        %270 = sbr.rel (%p268) target = $region44
      $region43: #{tpu_custom_call.1} parent=5 // pred_region
        %s271 = ssub.s32 %s15, 2
        // Predicated region
        $region45: #{tpu_custom_call.1} parent=43 // pred_check
          %p272 = pneg %p91
        $region46: #{tpu_custom_call.1} parent=43 // pred_check_branch
          %274 = sbr.rel (%p272) target = $region48
        $region47: #{tpu_custom_call.1} parent=43 // pred_region
          %s275 = sand.u32 %s76, 1
          %s276 = scalar_lea.sflag [#allocation4], %s275
          %s277 = sand.u32 %s76, 1
          %s278 = smul.addr %s277, 24
          %s279 = scalar_lea.vmem [#allocation7], %s278
          %281 = dma.done %s276, 384
        $region48: #{tpu_custom_call.1} parent=43 // pred_fallthru
          _
      $region44: #{tpu_custom_call.1} parent=5 // pred_fallthru
        _
    $region6: #{tpu_custom_call.1} parent=1 // loop_footer
      %s19 = sadd.s32 1, %s15
    $region7: #{tpu_custom_call.1} parent=1 // loop_footer_branch
      %14 = sbr.rel target = $region3
    $region8: #{tpu_custom_call.1} parent=1 // loop_exit
      _
    %282 = vsyncpa [#allocation3], 1
    %s283 = scalar_lea.sflag [#allocation3], 1
    %284 = vsyncpa %s283, 1
    %285 = vsyncpa [#allocation4], 1
    %s286 = scalar_lea.sflag [#allocation4], 1
    %287 = vsyncpa %s286, 1
    %288 = vsyncpa [#allocation5], 1
    %s289 = scalar_lea.sflag [#allocation5], 1
    %290 = vsyncpa %s289, 1

</llo_original>
